<compile_context>
chip_gen: v6e
topology: v6e:2x2x1
jax: 0.10.0
libtpu: 0.0.40
codegen_flags: <defaults>
</compile_context>

<pallas_src>
import functools

import jax
import jax.numpy as jnp
from jax.experimental import pallas as pl
from jax.experimental.pallas import tpu as pltpu

LANE = 128            # TPU lane width (last dim)
ROWS = 8              # physical sublane tile (second-to-last dim)
MAX_BLOCK_ROWS = 2048 # rows of 128 f32 per block = 1 MiB per input stream
NEG_FILL = -30.0      # sigmoid(-30) ~ 9.4e-14 -> numerically zero contribution


def _dice_kernel(x_ref, t_ref, loss_ref, acc_ref, *, total_rows, smooth):
    """Accumulates vector partials per grid step; finalizes on the last step.

    x_ref, t_ref : (block_rows, LANE) VMEM tiles of logits / targets (native dtype)
    loss_ref     : (1,) SMEM scalar output
    acc_ref      : (3, ROWS, LANE) f32 VMEM accumulator
                   [intersection, sum_sigmoid, sum_targets] partials
    """
    i = pl.program_id(0)
    block_rows = x_ref.shape[0]

    @pl.when(i == 0)
    def _():
        acc_ref[...] = jnp.zeros_like(acc_ref)

    x = x_ref[...].astype(jnp.float32)
    t = t_ref[...].astype(jnp.float32)

    # Mask rows beyond the end of the array (partial last block only).  This is
    # a static Python check: the branch is compiled in only when needed.
    if total_rows % block_rows != 0:
        rows_left = total_rows - i * block_rows
        row_ids = jax.lax.broadcasted_iota(jnp.int32, (block_rows, LANE), 0)
        valid = row_ids < rows_left
        x = jnp.where(valid, x, NEG_FILL)  # sigmoid(NEG_FILL) ~ 0
        t = jnp.where(valid, t, 0.0)

    s = jax.nn.sigmoid(x)   # EUP
    p = s * t               # VPU

    def part(q):  # (block_rows, LANE) -> (ROWS, LANE) via pure vreg adds
        return q.reshape(block_rows // ROWS, ROWS, LANE).sum(axis=0)

    acc_ref[0] = acc_ref[0] + part(p)   # intersection partials
    acc_ref[1] = acc_ref[1] + part(s)   # inputs.sum() partials
    acc_ref[2] = acc_ref[2] + part(t)   # targets.sum() partials

    @pl.when(i == pl.num_programs(0) - 1)
    def _():
        inter = jnp.sum(acc_ref[0])
        denom = jnp.sum(acc_ref[1]) + jnp.sum(acc_ref[2]) + smooth
        loss_ref[0] = 1.0 - (2.0 * inter + smooth) / denom


def dice_loss(inputs, targets, smooth=1.0):
    """Pallas implementation of DiceLoss.forward (returns a scalar f32)."""
    x = inputs.reshape(-1)          # free bitcast for contiguous arrays
    t = targets.reshape(-1)
    n = x.shape[0]

    # Pad only up to a multiple of 8*128 (and only when actually ragged).
    pad = (-n) % (ROWS * LANE)
    if pad:
        x = jnp.pad(x, (0, pad), constant_values=NEG_FILL)  # sigmoid(pad) ~ 0
        t = jnp.pad(t, (0, pad))                             # pads with 0
    rows = (n + pad) // LANE

    block_rows = min(MAX_BLOCK_ROWS, rows)   # always a multiple of ROWS
    grid = (pl.cdiv(rows, block_rows),)

    x2 = x.reshape(rows, LANE)
    t2 = t.reshape(rows, LANE)
    tile_spec = pl.BlockSpec((block_rows, LANE), lambda i: (i, 0))

    loss = pl.pallas_call(
        functools.partial(_dice_kernel, total_rows=rows, smooth=float(smooth)),
        out_shape=jax.ShapeDtypeStruct((1,), jnp.float32),
        grid_spec=pltpu.PrefetchScalarGridSpec(
            num_scalar_prefetch=0,
            grid=grid,
            in_specs=[tile_spec, tile_spec],
            out_specs=pl.BlockSpec(memory_space=pltpu.MemorySpace.SMEM),
            scratch_shapes=[pltpu.VMEM((3, ROWS, LANE), jnp.float32)],
        ),
        compiler_params=pltpu.CompilerParams(
            dimension_semantics=("arbitrary",)),  # reduction axis
    )(x2, t2)
    return loss[0]


def dice_loss_ref(inputs, targets, smooth=1.0):
    """Pure-JAX reference mirroring the PyTorch module."""
    s = jax.nn.sigmoid(inputs.astype(jnp.float32)).reshape(-1)
    t = targets.astype(jnp.float32).reshape(-1)
    inter = jnp.sum(s * t)
    dice = (2.0 * inter + smooth) / (jnp.sum(s) + jnp.sum(t) + smooth)
    return 1.0 - dice


if __name__ == "__main__":
    key = jax.random.PRNGKey(0)
    k1, k2, k3, k4 = jax.random.split(key, 4)

    # Case 1: small NCHW (batch=2, channels=4, spatial=16x16) — clean path
    # (element count already a multiple of 8*128, single grid step).
    inputs1 = jax.random.normal(k1, (2, 4, 16, 16), dtype=jnp.float32)
    targets1 = jax.random.bernoulli(k2, 0.5, (2, 4, 16, 16)).astype(jnp.float32)
    out1 = jax.block_until_ready(dice_loss(inputs1, targets1, smooth=1.0))
    ref1 = jax.block_until_ready(dice_loss_ref(inputs1, targets1, smooth=1.0))
    assert jnp.allclose(out1, ref1, rtol=1e-4, atol=1e-5), (out1, ref1)

    # Case 2: ragged size — exercises wrapper value-padding, multi-step grid,
    # and the in-kernel partial-last-block mask.
    inputs2 = jax.random.normal(k3, (2, 3, 250, 200), dtype=jnp.float32)
    targets2 = jax.random.bernoulli(k4, 0.3, (2, 3, 250, 200)).astype(jnp.float32)
    out2 = jax.block_until_ready(dice_loss(inputs2, targets2, smooth=1.0))
    ref2 = jax.block_until_ready(dice_loss_ref(inputs2, targets2, smooth=1.0))
    assert jnp.allclose(out2, ref2, rtol=1e-4, atol=1e-5), (out2, ref2)

    print("KERNEL_OK")
</pallas_src>

<mosaic_0001>
module attributes {stable_mosaic.version = 11 : i64} {
  func.func @_dice_kernel(%arg0: i32, %arg1: memref<16x128xf32, #tpu.memory_space<vmem>>, %arg2: memref<16x128xf32, #tpu.memory_space<vmem>>, %arg3: memref<1xf32, #tpu.memory_space<smem>>, %arg4: memref<3x8x128xf32, #tpu.memory_space<vmem>>) attributes {dimension_semantics = [#tpu.dimension_semantics<arbitrary>], iteration_bounds = array<i64: 1>, scalar_prefetch = 0 : i64, scratch_operands = 1 : i64, tpu.core_type = #tpu.core_type<tc>, window_params = [{transform_indices = @transform_0, window_bounds = array<i64: 16, 128>}, {transform_indices = @transform_1, window_bounds = array<i64: 16, 128>}, {transform_indices = @transform_2, window_bounds = array<i64: 1>}]} {
    %c0_i32 = arith.constant 0 : i32
    %0 = arith.cmpi eq, %arg0, %c0_i32 : i32
    %1 = arith.extui %0 : i1 to i32
    %c0_i32_0 = arith.constant 0 : i32
    %2 = arith.cmpi ne, %1, %c0_i32_0 : i32
    scf.if %2 {
      %cst_25 = arith.constant 0.000000e+00 : f32
      %38 = vector.broadcast %cst_25 : f32 to vector<3x8x128xf32>
      %c0_26 = arith.constant 0 : index
      %c0_27 = arith.constant 0 : index
      %c0_28 = arith.constant 0 : index
      %39 = vector.load %arg4[%c0_26, %c0_27, %c0_28] : memref<3x8x128xf32, #tpu.memory_space<vmem>>, vector<3x8x128xf32>
      tpu.vector_store %arg4[%c0_26, %c0_27, %c0_28], %38 {strides = array<i32>} : memref<3x8x128xf32, #tpu.memory_space<vmem>>, vector<3x8x128xf32>,
    } else {
    }
    %c0 = arith.constant 0 : index
    %c0_1 = arith.constant 0 : index
    %3 = vector.load %arg1[%c0, %c0_1] : memref<16x128xf32, #tpu.memory_space<vmem>>, vector<16x128xf32>
    %c0_2 = arith.constant 0 : index
    %c0_3 = arith.constant 0 : index
    %4 = vector.load %arg2[%c0_2, %c0_3] : memref<16x128xf32, #tpu.memory_space<vmem>>, vector<16x128xf32>
    %5 = arith.negf %3 : vector<16x128xf32>
    %6 = math.exp %5 : vector<16x128xf32>
    %cst = arith.constant 1.000000e+00 : f32
    %7 = vector.broadcast %cst : f32 to vector<16x128xf32>
    %8 = arith.addf %7, %6 : vector<16x128xf32>
    %9 = arith.divf %7, %8 : vector<16x128xf32>
    %10 = arith.mulf %9, %4 : vector<16x128xf32>
    %c0_4 = arith.constant 0 : index
    %c0_5 = arith.constant 0 : index
    %c0_6 = arith.constant 0 : index
    %11 = vector.load %arg4[%c0_4, %c0_5, %c0_6] : memref<3x8x128xf32, #tpu.memory_space<vmem>>, vector<1x8x128xf32>
    %12 = vector.shape_cast %11 : vector<1x8x128xf32> to vector<8x128xf32>
    %13 = vector.shape_cast %10 : vector<16x128xf32> to vector<2x8x128xf32>
    %cst_7 = arith.constant dense<0.000000e+00> : vector<8x128xf32>
    %14 = vector.multi_reduction <add>, %13, %cst_7 [0] : vector<2x8x128xf32> to vector<8x128xf32>
    %15 = arith.addf %12, %14 : vector<8x128xf32>
    %c0_8 = arith.constant 0 : index
    %c0_9 = arith.constant 0 : index
    %c0_10 = arith.constant 0 : index
    %16 = vector.load %arg4[%c0_8, %c0_9, %c0_10] : memref<3x8x128xf32, #tpu.memory_space<vmem>>, vector<1x8x128xf32>
    %17 = vector.shape_cast %16 : vector<1x8x128xf32> to vector<8x128xf32>
    %18 = vector.shape_cast %15 : vector<8x128xf32> to vector<1x8x128xf32>
    tpu.vector_store %arg4[%c0_8, %c0_9, %c0_10], %18 {strides = array<i32>} : memref<3x8x128xf32, #tpu.memory_space<vmem>>, vector<1x8x128xf32>,
    %c1 = arith.constant 1 : index
    %c0_11 = arith.constant 0 : index
    %c0_12 = arith.constant 0 : index
    %19 = vector.load %arg4[%c1, %c0_11, %c0_12] : memref<3x8x128xf32, #tpu.memory_space<vmem>>, vector<1x8x128xf32>
    %20 = vector.shape_cast %19 : vector<1x8x128xf32> to vector<8x128xf32>
    %21 = vector.shape_cast %9 : vector<16x128xf32> to vector<2x8x128xf32>
    %cst_13 = arith.constant dense<0.000000e+00> : vector<8x128xf32>
    %22 = vector.multi_reduction <add>, %21, %cst_13 [0] : vector<2x8x128xf32> to vector<8x128xf32>
    %23 = arith.addf %20, %22 : vector<8x128xf32>
    %c1_14 = arith.constant 1 : index
    %c0_15 = arith.constant 0 : index
    %c0_16 = arith.constant 0 : index
    %24 = vector.load %arg4[%c1_14, %c0_15, %c0_16] : memref<3x8x128xf32, #tpu.memory_space<vmem>>, vector<1x8x128xf32>
    %25 = vector.shape_cast %24 : vector<1x8x128xf32> to vector<8x128xf32>
    %26 = vector.shape_cast %23 : vector<8x128xf32> to vector<1x8x128xf32>
    tpu.vector_store %arg4[%c1_14, %c0_15, %c0_16], %26 {strides = array<i32>} : memref<3x8x128xf32, #tpu.memory_space<vmem>>, vector<1x8x128xf32>,
    %c2 = arith.constant 2 : index
    %c0_17 = arith.constant 0 : index
    %c0_18 = arith.constant 0 : index
    %27 = vector.load %arg4[%c2, %c0_17, %c0_18] : memref<3x8x128xf32, #tpu.memory_space<vmem>>, vector<1x8x128xf32>
    %28 = vector.shape_cast %27 : vector<1x8x128xf32> to vector<8x128xf32>
    %29 = vector.shape_cast %4 : vector<16x128xf32> to vector<2x8x128xf32>
    %cst_19 = arith.constant dense<0.000000e+00> : vector<8x128xf32>
    %30 = vector.multi_reduction <add>, %29, %cst_19 [0] : vector<2x8x128xf32> to vector<8x128xf32>
    %31 = arith.addf %28, %30 : vector<8x128xf32>
    %c2_20 = arith.constant 2 : index
    %c0_21 = arith.constant 0 : index
    %c0_22 = arith.constant 0 : index
    %32 = vector.load %arg4[%c2_20, %c0_21, %c0_22] : memref<3x8x128xf32, #tpu.memory_space<vmem>>, vector<1x8x128xf32>
    %33 = vector.shape_cast %32 : vector<1x8x128xf32> to vector<8x128xf32>
    %34 = vector.shape_cast %31 : vector<8x128xf32> to vector<1x8x128xf32>
    tpu.vector_store %arg4[%c2_20, %c0_21, %c0_22], %34 {strides = array<i32>} : memref<3x8x128xf32, #tpu.memory_space<vmem>>, vector<1x8x128xf32>,
    %c0_i32_23 = arith.constant 0 : i32
    %35 = arith.cmpi eq, %arg0, %c0_i32_23 : i32
    %36 = arith.extui %35 : i1 to i32
    %c0_i32_24 = arith.constant 0 : i32
    %37 = arith.cmpi ne, %36, %c0_i32_24 : i32
    scf.if %37 {
      %c0_25 = arith.constant 0 : index
      %c0_26 = arith.constant 0 : index
      %c0_27 = arith.constant 0 : index
      %38 = vector.load %arg4[%c0_25, %c0_26, %c0_27] : memref<3x8x128xf32, #tpu.memory_space<vmem>>, vector<1x8x128xf32>
      %39 = vector.shape_cast %38 : vector<1x8x128xf32> to vector<8x128xf32>
      %40 = vector.shape_cast %39 : vector<8x128xf32> to vector<1x8x128xf32>
      %cst_28 = arith.constant dense<0.000000e+00> : vector<1xf32>
      %41 = vector.multi_reduction <add>, %40, %cst_28 [1, 2] : vector<1x8x128xf32> to vector<1xf32>
      %42 = vector.shape_cast %41 : vector<1xf32> to vector<1x1x1xf32>
      %43 = vector.extract %42[0, 0, 0] : f32 from vector<1x1x1xf32>
      %c1_29 = arith.constant 1 : index
      %c0_30 = arith.constant 0 : index
      %c0_31 = arith.constant 0 : index
      %44 = vector.load %arg4[%c1_29, %c0_30, %c0_31] : memref<3x8x128xf32, #tpu.memory_space<vmem>>, vector<1x8x128xf32>
      %45 = vector.shape_cast %44 : vector<1x8x128xf32> to vector<8x128xf32>
      %46 = vector.shape_cast %45 : vector<8x128xf32> to vector<1x8x128xf32>
      %cst_32 = arith.constant dense<0.000000e+00> : vector<1xf32>
      %47 = vector.multi_reduction <add>, %46, %cst_32 [1, 2] : vector<1x8x128xf32> to vector<1xf32>
      %48 = vector.shape_cast %47 : vector<1xf32> to vector<1x1x1xf32>
      %49 = vector.extract %48[0, 0, 0] : f32 from vector<1x1x1xf32>
      %c2_33 = arith.constant 2 : index
      %c0_34 = arith.constant 0 : index
      %c0_35 = arith.constant 0 : index
      %50 = vector.load %arg4[%c2_33, %c0_34, %c0_35] : memref<3x8x128xf32, #tpu.memory_space<vmem>>, vector<1x8x128xf32>
      %51 = vector.shape_cast %50 : vector<1x8x128xf32> to vector<8x128xf32>
      %52 = vector.shape_cast %51 : vector<8x128xf32> to vector<1x8x128xf32>
      %cst_36 = arith.constant dense<0.000000e+00> : vector<1xf32>
      %53 = vector.multi_reduction <add>, %52, %cst_36 [1, 2] : vector<1x8x128xf32> to vector<1xf32>
      %54 = vector.shape_cast %53 : vector<1xf32> to vector<1x1x1xf32>
      %55 = vector.extract %54[0, 0, 0] : f32 from vector<1x1x1xf32>
      %56 = arith.addf %49, %55 : f32
      %cst_37 = arith.constant 1.000000e+00 : f32
      %57 = arith.addf %56, %cst_37 : f32
      %cst_38 = arith.constant 2.000000e+00 : f32
      %58 = arith.mulf %cst_38, %43 : f32
      %cst_39 = arith.constant 1.000000e+00 : f32
      %59 = arith.addf %58, %cst_39 : f32
      %60 = arith.divf %59, %57 : f32
      %cst_40 = arith.constant 1.000000e+00 : f32
      %61 = arith.subf %cst_40, %60 : f32
      %c0_41 = arith.constant 0 : index
      %62 = memref.load %arg3[%c0_41] : memref<1xf32, #tpu.memory_space<smem>>
      memref.store %61, %arg3[%c0_41] : memref<1xf32, #tpu.memory_space<smem>>
    } else {
    }
    return
  }
  func.func @transform_0(%arg0: i32) -> (i32, i32) {
    %c0_i32 = arith.constant 0 : i32
    %c0_i32_0 = arith.constant 0 : i32
    return %arg0, %c0_i32 : i32, i32
  }
  func.func @transform_1(%arg0: i32) -> (i32, i32) {
    %c0_i32 = arith.constant 0 : i32
    %c0_i32_0 = arith.constant 0 : i32
    return %arg0, %c0_i32 : i32, i32
  }
  func.func @transform_2(%arg0: i32) -> i32 {
    %c0_i32 = arith.constant 0 : i32
    %c0_i32_0 = arith.constant 0 : i32
    return %c0_i32 : i32
  }
}

</mosaic_0001>

<llo_original>
// kernel: tpu_custom_call.1
$region0: #{tpu_custom_call.1}
  #allocation0 [shape = 'u32[]', space=smem, size = 0x4, offset = 0x4, fixed_abs, tag = 'smem constant byte address 0x4 - core index']
  #allocation1 [shape = 'u32[144,128]{1,0:T(1,128)}', space=vmem, size = 0x12000, scoped, tag = 'internal scratch']
  #allocation2 [shape = 'f32[3,8,128]{2,1,0:T(8,128)}', space=vmem, size = 0x3000, scoped, tag = 'scratch operand']
  %s0 = inlined_call_operand.hbm [shape: f32[16,128], index: 0, kind: input, shape index: {}]
  %s1 = inlined_call_operand.hbm [shape: f32[16,128], index: 1, kind: input, shape index: {}]
  %s2 = inlined_call_operand.hbm [shape: f32[1], index: 2, kind: output, shape index: {}]
  %s3 = sld [smem:[#allocation0]]
  $region34: #{tpu_custom_call.1} parent=0
    _
  %s5 = ssub.s32 1, %s3
  %s6 = scalar_select 0, %s5, %s3
  $region1: #{tpu_custom_call.1} parent=0
    #allocation3 [shape = 'u8[8192]{0}', space=vmem, size = 0x2000, scoped, tag = 'input window, operand 0, single buffered']
    #allocation4 [shape = 's32[1]{0}', space=sflag, size = 0x4, scoped, tag = 'scoped memory for tpu_custom_call.1']
    #allocation5 [shape = 's32[1]{0}', space=sflag, size = 0x4, scoped, tag = 'scoped memory for tpu_custom_call.1']
    #allocation6 [shape = 'u8[8192]{0}', space=vmem, size = 0x2000, scoped, tag = 'input window, operand 1, single buffered']
    #allocation7 [shape = 's32[1]{0}', space=sflag, size = 0x4, scoped, tag = 'scoped memory for tpu_custom_call.1']
    #allocation8 [shape = 'u8[512]{0}', space=smem, size = 0x200, scoped, tag = 'output window, operand 0, single buffered']
    %7 = vsyncpa [#allocation4], 0
    %8 = vsyncpa [#allocation7], 0
    %9 = vsyncpa [#allocation5], 0
    // Predicated region
    $region2: #{tpu_custom_call.1} parent=1 // pred_check
      _
    $region3: #{tpu_custom_call.1} parent=1 // pred_check_branch
      %11 = sbr.rel (0) target = $region5
    $region4: #{tpu_custom_call.1} parent=1 // pred_region
      %s13 = ssub.s32 256, 256
      %14 = vsyncadd [#allocation4], %s13
      %s15 = sshll.u32 [#allocation3], 4
      %s16 = int_to_ptr.vmem [resolvable:$true] %s15
      %21 = dma.hbm_to_vmem [thread:$0]  %s0, 256, %s16, [#allocation4], 128, 128, 8
    $region5: #{tpu_custom_call.1} parent=1 // pred_fallthru
      _
    // Predicated region
    $region6: #{tpu_custom_call.1} parent=1 // pred_check
      _
    $region7: #{tpu_custom_call.1} parent=1 // pred_check_branch
      %23 = sbr.rel (0) target = $region9
    $region8: #{tpu_custom_call.1} parent=1 // pred_region
      %s25 = ssub.s32 256, 256
      %26 = vsyncadd [#allocation7], %s25
      %s27 = sshll.u32 [#allocation6], 4
      %s28 = int_to_ptr.vmem [resolvable:$true] %s27
      %33 = dma.hbm_to_vmem [thread:$0]  %s1, 256, %s28, [#allocation7], 128, 128, 8
    $region9: #{tpu_custom_call.1} parent=1 // pred_fallthru
      _
    // Predicated region
    $region10: #{tpu_custom_call.1} parent=1 // pred_check
      _
    $region11: #{tpu_custom_call.1} parent=1 // pred_check_branch
      %35 = sbr.rel (0) target = $region13
    $region12: #{tpu_custom_call.1} parent=1 // pred_region
      %36 = dma.done [#allocation4], 256
    $region13: #{tpu_custom_call.1} parent=1 // pred_fallthru
      _
    // Predicated region
    $region14: #{tpu_custom_call.1} parent=1 // pred_check
      _
    $region15: #{tpu_custom_call.1} parent=1 // pred_check_branch
      %38 = sbr.rel (0) target = $region17
    $region16: #{tpu_custom_call.1} parent=1 // pred_region
      %39 = dma.done [#allocation7], 256
    $region17: #{tpu_custom_call.1} parent=1 // pred_fallthru
      _
    %p40 = scmp.eq.s32.totalorder 0, 0
    // Predicated region
    $region18: #{tpu_custom_call.1} parent=1 // pred_check
      %p41 = pneg %p40
    $region19: #{tpu_custom_call.1} parent=1 // pred_check_branch
      %43 = sbr.rel (%p41) target = $region21
    $region20: #{tpu_custom_call.1} parent=1 // pred_region
      %44 = vst [vmem:[#allocation2] sm:$0xff] 0.0
      %45 = vst [vmem:[#allocation2 + $0x8] sm:$0xff] 0.0
      %46 = vst [vmem:[#allocation2 + $0x10] sm:$0xff] 0.0
    $region21: #{tpu_custom_call.1} parent=1 // pred_fallthru
      _
    %v47 = vld [vmem:[#allocation3] sm:$0xff]
    %v48 = vld [vmem:[#allocation3 + $0x8] sm:$0xff]
    %v49 = vld [vmem:[#allocation6] sm:$0xff]
    %v50 = vld [vmem:[#allocation6 + $0x8] sm:$0xff]
    %v51 = vxor.u32 %v47, 2147483648
    %v52 = vxor.u32 %v48, 2147483648
    %v53 = vmul.f32 %v51, 1.442695
    %v54 = vpow.pop %v53
    %v55 = vmul.f32 %v52, 1.442695
    %v56 = vpow.pop %v55
    %v57 = vadd.f32 %v54, 1.0
    %v58 = vadd.f32 %v56, 1.0
    %v59 = vrcp.pop %v57
    %v60 = vmul.f32 1.0, %v59
    %v61 = vrcp.pop %v58
    %v62 = vmul.f32 1.0, %v61
    %v63 = vmul.f32 %v60, %v49
    %v64 = vmul.f32 %v62, %v50
    %v65 = vld [vmem:[#allocation2] sm:$0xff]
    %v66 = vadd.f32 %v63, %v64
    %v67 = vadd.f32 %v65, %v66
    %68 = vst [vmem:[#allocation2] sm:$0xff] %v67
    %s69 = scalar_lea.vmem [#allocation2], 8
    %v70 = vld [vmem:[%s69] sm:$0xff]
    %v71 = vadd.f32 %v60, %v62
    %v72 = vadd.f32 %v70, %v71
    %73 = vst [vmem:[%s69] sm:$0xff] %v72
    %s74 = scalar_lea.vmem [#allocation2], 16
    %v75 = vld [vmem:[%s74] sm:$0xff]
    %v76 = vadd.f32 %v49, %v50
    %v77 = vadd.f32 %v75, %v76
    %78 = vst [vmem:[%s74] sm:$0xff] %v77
    // Predicated region
    $region22: #{tpu_custom_call.1} parent=1 // pred_check
      %p79 = pneg %p40
    $region23: #{tpu_custom_call.1} parent=1 // pred_check_branch
      %81 = sbr.rel (%p79) target = $region25
    $region24: #{tpu_custom_call.1} parent=1 // pred_region
      %v82 = vld [vmem:[#allocation2] sm:$0xff]
      %83 = vadd.xlane.f32.xlu0 %v82
      %v84 = vpop.xlane.xlu0 %83
      %v85 = vrot.slane %v84, 4
      %v86 = vadd.f32 %v84, %v85
      %v87 = vrot.slane %v86, 2
      %v88 = vadd.f32 %v86, %v87
      %v89 = vrot.slane %v88, 1
      %v90 = vadd.f32 %v88, %v89
      %s91 = vtos %v90
      %v92 = vld [vmem:[%s69] sm:$0xff]
      %93 = vadd.xlane.f32.xlu0 %v92
      %v94 = vpop.xlane.xlu0 %93
      %v95 = vrot.slane %v94, 4
      %v96 = vadd.f32 %v94, %v95
      %v97 = vrot.slane %v96, 2
      %v98 = vadd.f32 %v96, %v97
      %v99 = vrot.slane %v98, 1
      %v100 = vadd.f32 %v98, %v99
      %s101 = vtos %v100
      %v102 = vld [vmem:[%s74] sm:$0xff]
      %103 = vadd.xlane.f32.xlu0 %v102
      %v104 = vpop.xlane.xlu0 %103
      %v105 = vrot.slane %v104, 4
      %v106 = vadd.f32 %v104, %v105
      %v107 = vrot.slane %v106, 2
      %v108 = vadd.f32 %v106, %v107
      %v109 = vrot.slane %v108, 1
      %v110 = vadd.f32 %v108, %v109
      %s111 = vtos %v110
      %s112 = sadd.f32 %s101, %s111
      %s113 = sadd.f32 %s112, 1.0
      %s114 = smul.f32 %s91, 2.0
      %s115 = sadd.f32 %s114, 1.0
      %v116 = vstv %s113
      %v117 = vrcp.pop %v116
      %s118 = vtos %v117
      %s119 = smul.f32 %s115, %s118
      %s120 = ssub.f32 1.0, %s119
      %s121 = scalar_lea.smem [#allocation8], 0
      %122 = sst [smem:[%s121]] %s120
    $region25: #{tpu_custom_call.1} parent=1 // pred_fallthru
      _
    // Predicated region
    $region26: #{tpu_custom_call.1} parent=1 // pred_check
      _
    $region27: #{tpu_custom_call.1} parent=1 // pred_check_branch
      %124 = sbr.rel (0) target = $region29
    $region28: #{tpu_custom_call.1} parent=1 // pred_region
      %s126 = ssub.s32 16, 16
      %127 = vsyncadd [#allocation5], %s126
      %130 = dma.smem_to_hbm [#allocation8], 16, %s2, [#allocation5]
    $region29: #{tpu_custom_call.1} parent=1 // pred_fallthru
      _
    // Predicated region
    $region30: #{tpu_custom_call.1} parent=1 // pred_check
      _
    $region31: #{tpu_custom_call.1} parent=1 // pred_check_branch
      %132 = sbr.rel (0) target = $region33
    $region32: #{tpu_custom_call.1} parent=1 // pred_region
      %133 = dma.done [#allocation5], 16
    $region33: #{tpu_custom_call.1} parent=1 // pred_fallthru
      _
    %134 = sfence
    %135 = vsyncpa [#allocation4], 1
    %136 = vsyncpa [#allocation7], 1
    %137 = vsyncpa [#allocation5], 1

</llo_original>
